<compile_context>
chip_gen: v7x
topology: tpu7x:2x2x1
jax: 0.10.0
libtpu: 0.0.40
codegen_flags: <defaults>
</compile_context>

<pallas_src>
import functools

import jax
import jax.numpy as jnp
from jax import lax
from jax.experimental import pallas as pl
from jax.experimental.pallas import tpu as pltpu

LANES = 128
SUBLANES = 8
MAX_TILE_ROWS = 512   # 512 * 128 * 4 B = 256 KiB membrane scratch / time slice
MAX_T_CHUNK = 16      # target time steps streamed per grid step
SUB_ROWS = 8          # membrane carry per inner fori iteration = 1 f32 vreg


def _round_up(a, b):
    return pl.cdiv(a, b) * b


def _lif_kernel(x_ref, out_ref, mem_ref, *, t_chunk, n_sub, sub_rows,
                inv_tau, v_threshold, v_reset):
    # Grid = (B, feature_tiles, time_chunks); time (axis 2) is innermost and
    # sequential, so the VMEM membrane scratch carries across time chunks.
    tc = pl.program_id(2)

    # Reset the membrane potential at the start of each (batch, feature-tile)
    # time sequence (mirrors self.reset()).
    @pl.when(tc == 0)
    def _():
        mem_ref[...] = jnp.zeros_like(mem_ref)

    def sub_tile(s, carry):
        r0 = pl.multiple_of(s * sub_rows, sub_rows)
        rsl = pl.ds(r0, sub_rows)
        # Membrane for this sub-tile lives in vregs for the whole time chunk;
        # VMEM scratch is touched only at the chunk boundaries.
        mem = mem_ref[rsl, :]
        for t in range(t_chunk):  # fully unrolled (static)
            # Leaky integration: multiply by precomputed 1/tau (no f32 divide).
            mem = mem * inv_tau + x_ref[0, t, rsl, :].astype(jnp.float32)
            # ActFun forward = Heaviside(mem - v_threshold).
            spiked = (mem - v_threshold) > 0.0
            out_ref[0, t, rsl, :] = spiked.astype(out_ref.dtype)
            # Hard reset (v_reset is not None branch): single select.
            mem = jnp.where(spiked, jnp.float32(v_reset), mem)
        mem_ref[rsl, :] = mem
        return carry

    lax.fori_loop(0, n_sub, sub_tile, 0)


def lif_forward(x, *, v_threshold=0.5, v_reset=0.0, tau=5.0):
    """x: [B, T, C, H, W] -> spikes, same shape/dtype as x."""
    B, T, C, H, W = x.shape
    N = C * H * W

    # Flatten CHW; pad only to the sublane/lane minimum (8 x 128 elements).
    rows = _round_up(max(pl.cdiv(N, LANES), SUBLANES), SUBLANES)
    n_padded = rows * LANES

    # Balanced feature tiles (<= MAX_TILE_ROWS rows, multiples of 8); the last
    # tile may slightly overhang `rows` (Pallas clips the DMA, drops OOB writes).
    n_f_tiles = pl.cdiv(rows, MAX_TILE_ROWS)
    tile_rows = _round_up(pl.cdiv(rows, n_f_tiles), SUBLANES)
    # v7x megacore: 2 TensorCores need >= 2 units of parallel grid work.
    if B * n_f_tiles < 2 and rows >= 2 * SUBLANES:
        n_f_tiles = 2
        tile_rows = _round_up(pl.cdiv(rows, 2), SUBLANES)
    assert tile_rows % SUBLANES == 0 and tile_rows % SUB_ROWS == 0
    assert n_f_tiles * tile_rows >= rows

    # Fixed-target time chunking with a cdiv grid: performance no longer depends
    # on T's factorization; chunk size is balanced so tail overhang is minimal.
    n_t_chunks = pl.cdiv(T, MAX_T_CHUNK)
    t_chunk = pl.cdiv(T, n_t_chunks)
    assert n_t_chunks * t_chunk >= T

    xf = x.reshape(B, T, N)
    if n_padded != N:
        # TODO(synk): this pad (and the matching output slice) costs one extra
        # HBM round-trip; it only fires when C*H*W is not a multiple of 8*128.
        xf = jnp.pad(xf, ((0, 0), (0, 0), (0, n_padded - N)))
    xf = xf.reshape(B, T, rows, LANES)

    # TODO(synk): if tau / v_threshold / v_reset vary call-to-call, pass them as
    # SMEM scalars (scalar prefetch) instead of baked constants to avoid recompiles.
    kernel = functools.partial(
        _lif_kernel,
        t_chunk=int(t_chunk),
        n_sub=int(tile_rows // SUB_ROWS),
        sub_rows=SUB_ROWS,
        inv_tau=float(1.0 / tau),
        v_threshold=float(v_threshold),
        v_reset=float(v_reset),
    )

    block = (1, t_chunk, tile_rows, LANES)
    blk_bytes = t_chunk * tile_rows * LANES * x.dtype.itemsize
    scratch_bytes = tile_rows * LANES * 4
    # Double-buffered in + out windows plus membrane scratch, with headroom;
    # capped well under v7x's 64 MiB physical VMEM.
    vmem_limit = int(min(48 << 20,
                         max(32 << 20, 4 * blk_bytes + scratch_bytes + (8 << 20))))

    out = pl.pallas_call(
        kernel,
        out_shape=jax.ShapeDtypeStruct((B, T, rows, LANES), x.dtype),
        grid_spec=pltpu.PrefetchScalarGridSpec(
            num_scalar_prefetch=0,
            grid=(B, n_f_tiles, n_t_chunks),
            in_specs=[pl.BlockSpec(block, lambda b, f, t: (b, t, f, 0))],
            out_specs=pl.BlockSpec(block, lambda b, f, t: (b, t, f, 0)),
            scratch_shapes=[pltpu.VMEM((tile_rows, LANES), jnp.float32)],
        ),
        compiler_params=pltpu.CompilerParams(
            # batch & feature tiles are independent (megacore-shardable on v7x);
            # the time axis is a recurrence and must stay sequential.
            dimension_semantics=("parallel", "parallel", "arbitrary"),
            vmem_limit_bytes=vmem_limit,
        ),
    )(xf)

    out = out.reshape(B, T, n_padded)
    if n_padded != N:
        out = out[:, :, :N]
    return out.reshape(B, T, C, H, W)


def lif_reference(x, *, v_threshold=0.5, v_reset=0.0, tau=5.0):
    """Pure-JAX mirror of the PyTorch LIFNode.forward loop (hard reset).

    Uses the same mul-by-(1/tau) formulation as the kernel; this matches
    PyTorch's `mem / tau` to within 1 ulp and is identical away from the
    Heaviside discontinuity (documented correctness note from review).
    """
    inv_tau = 1.0 / tau
    T = x.shape[1]
    mem = jnp.zeros_like(x[:, 0])
    spikes = []
    for t in range(T):
        mem = mem * inv_tau + x[:, t]
        spike = ((mem - v_threshold) > 0.0).astype(x.dtype)
        mem = (1.0 - spike) * mem + v_reset * spike   # PyTorch hard-reset form
        spikes.append(spike)
    return jnp.stack(spikes, axis=1)


if __name__ == "__main__":
    key = jax.random.PRNGKey(0)
    B, T, C, H, W = 2, 8, 4, 16, 16
    x = jax.random.normal(key, (B, T, C, H, W), dtype=jnp.float32)

    out = jax.block_until_ready(lif_forward(x))
    ref = lif_reference(x)

    assert out.shape == x.shape and out.dtype == x.dtype
    assert jnp.allclose(out, ref), "Pallas LIF kernel mismatch vs reference"
    print("KERNEL_OK")
</pallas_src>

<mosaic_0001>
module attributes {stable_mosaic.version = 11 : i64} {
  func.func @_lif_kernel(%arg0: i32, %arg1: i32, %arg2: i32, %arg3: memref<1x8x8x128xf32, #tpu.memory_space<vmem>>, %arg4: memref<1x8x8x128xf32, #tpu.memory_space<vmem>>, %arg5: memref<8x128xf32, #tpu.memory_space<vmem>>) attributes {dimension_semantics = [#tpu.dimension_semantics<parallel>, #tpu.dimension_semantics<parallel>, #tpu.dimension_semantics<arbitrary>], iteration_bounds = array<i64: 2, 1, 1>, scalar_prefetch = 0 : i64, scratch_operands = 1 : i64, tpu.core_type = #tpu.core_type<tc>, window_params = [{transform_indices = @transform_0, window_bounds = array<i64: 1, 8, 8, 128>}, {transform_indices = @transform_1, window_bounds = array<i64: 1, 8, 8, 128>}]} {
    %c0_i32 = arith.constant 0 : i32
    %0 = arith.cmpi eq, %arg2, %c0_i32 : i32
    %1 = arith.extui %0 : i1 to i32
    %c0_i32_0 = arith.constant 0 : i32
    %2 = arith.cmpi ne, %1, %c0_i32_0 : i32
    scf.if %2 {
      %cst_75 = arith.constant 0.000000e+00 : f32
      %153 = vector.broadcast %cst_75 : f32 to vector<8x128xf32>
      %c0_76 = arith.constant 0 : index
      %c0_77 = arith.constant 0 : index
      %154 = vector.load %arg5[%c0_76, %c0_77] : memref<8x128xf32, #tpu.memory_space<vmem>>, vector<8x128xf32>
      tpu.vector_store %arg5[%c0_76, %c0_77], %153 {strides = array<i32>} : memref<8x128xf32, #tpu.memory_space<vmem>>, vector<8x128xf32>,
    } else {
    }
    %c0_i32_1 = arith.constant 0 : i32
    %c8_i32 = arith.constant 8 : i32
    %3 = arith.muli %c0_i32_1, %c8_i32 : i32
    %4 = tpu.assume_multiple %3, 8 : i32
    %5 = arith.index_cast %4 : i32 to index
    %c0 = arith.constant 0 : index
    %6 = vector.load %arg5[%5, %c0] : memref<8x128xf32, #tpu.memory_space<vmem>>, vector<8x128xf32>
    %cst = arith.constant 2.000000e-01 : f32
    %7 = vector.broadcast %cst : f32 to vector<8x128xf32>
    %8 = arith.mulf %6, %7 : vector<8x128xf32>
    %c0_2 = arith.constant 0 : index
    %c0_3 = arith.constant 0 : index
    %9 = arith.index_cast %4 : i32 to index
    %c0_4 = arith.constant 0 : index
    %10 = vector.load %arg3[%c0_2, %c0_3, %9, %c0_4] : memref<1x8x8x128xf32, #tpu.memory_space<vmem>>, vector<1x1x8x128xf32>
    %11 = vector.shape_cast %10 : vector<1x1x8x128xf32> to vector<8x128xf32>
    %12 = arith.addf %8, %11 : vector<8x128xf32>
    %cst_5 = arith.constant 5.000000e-01 : f32
    %13 = vector.broadcast %cst_5 : f32 to vector<8x128xf32>
    %14 = arith.subf %12, %13 : vector<8x128xf32>
    %cst_6 = arith.constant 0.000000e+00 : f32
    %15 = vector.broadcast %cst_6 : f32 to vector<8x128xf32>
    %16 = arith.cmpf ogt, %14, %15 : vector<8x128xf32>
    %17 = arith.extui %16 : vector<8x128xi1> to vector<8x128xi32>
    %18 = arith.sitofp %17 : vector<8x128xi32> to vector<8x128xf32>
    %c0_7 = arith.constant 0 : index
    %c0_8 = arith.constant 0 : index
    %19 = arith.index_cast %4 : i32 to index
    %c0_9 = arith.constant 0 : index
    %20 = vector.load %arg4[%c0_7, %c0_8, %19, %c0_9] : memref<1x8x8x128xf32, #tpu.memory_space<vmem>>, vector<1x1x8x128xf32>
    %21 = vector.shape_cast %20 : vector<1x1x8x128xf32> to vector<8x128xf32>
    %22 = vector.shape_cast %18 : vector<8x128xf32> to vector<1x1x8x128xf32>
    tpu.vector_store %arg4[%c0_7, %c0_8, %19, %c0_9], %22 {strides = array<i32>} : memref<1x8x8x128xf32, #tpu.memory_space<vmem>>, vector<1x1x8x128xf32>,
    %cst_10 = arith.constant 0.000000e+00 : f32
    %23 = vector.broadcast %cst_10 : f32 to vector<8x128xf32>
    %24 = arith.select %16, %23, %12 : vector<8x128xi1>, vector<8x128xf32>
    %cst_11 = arith.constant 2.000000e-01 : f32
    %25 = vector.broadcast %cst_11 : f32 to vector<8x128xf32>
    %26 = arith.mulf %24, %25 : vector<8x128xf32>
    %c0_12 = arith.constant 0 : index
    %c1 = arith.constant 1 : index
    %27 = arith.index_cast %4 : i32 to index
    %c0_13 = arith.constant 0 : index
    %28 = vector.load %arg3[%c0_12, %c1, %27, %c0_13] : memref<1x8x8x128xf32, #tpu.memory_space<vmem>>, vector<1x1x8x128xf32>
    %29 = vector.shape_cast %28 : vector<1x1x8x128xf32> to vector<8x128xf32>
    %30 = arith.addf %26, %29 : vector<8x128xf32>
    %cst_14 = arith.constant 5.000000e-01 : f32
    %31 = vector.broadcast %cst_14 : f32 to vector<8x128xf32>
    %32 = arith.subf %30, %31 : vector<8x128xf32>
    %cst_15 = arith.constant 0.000000e+00 : f32
    %33 = vector.broadcast %cst_15 : f32 to vector<8x128xf32>
    %34 = arith.cmpf ogt, %32, %33 : vector<8x128xf32>
    %35 = arith.extui %34 : vector<8x128xi1> to vector<8x128xi32>
    %36 = arith.sitofp %35 : vector<8x128xi32> to vector<8x128xf32>
    %c0_16 = arith.constant 0 : index
    %c1_17 = arith.constant 1 : index
    %37 = arith.index_cast %4 : i32 to index
    %c0_18 = arith.constant 0 : index
    %38 = vector.load %arg4[%c0_16, %c1_17, %37, %c0_18] : memref<1x8x8x128xf32, #tpu.memory_space<vmem>>, vector<1x1x8x128xf32>
    %39 = vector.shape_cast %38 : vector<1x1x8x128xf32> to vector<8x128xf32>
    %40 = vector.shape_cast %36 : vector<8x128xf32> to vector<1x1x8x128xf32>
    tpu.vector_store %arg4[%c0_16, %c1_17, %37, %c0_18], %40 {strides = array<i32>} : memref<1x8x8x128xf32, #tpu.memory_space<vmem>>, vector<1x1x8x128xf32>,
    %cst_19 = arith.constant 0.000000e+00 : f32
    %41 = vector.broadcast %cst_19 : f32 to vector<8x128xf32>
    %42 = arith.select %34, %41, %30 : vector<8x128xi1>, vector<8x128xf32>
    %cst_20 = arith.constant 2.000000e-01 : f32
    %43 = vector.broadcast %cst_20 : f32 to vector<8x128xf32>
    %44 = arith.mulf %42, %43 : vector<8x128xf32>
    %c0_21 = arith.constant 0 : index
    %c2 = arith.constant 2 : index
    %45 = arith.index_cast %4 : i32 to index
    %c0_22 = arith.constant 0 : index
    %46 = vector.load %arg3[%c0_21, %c2, %45, %c0_22] : memref<1x8x8x128xf32, #tpu.memory_space<vmem>>, vector<1x1x8x128xf32>
    %47 = vector.shape_cast %46 : vector<1x1x8x128xf32> to vector<8x128xf32>
    %48 = arith.addf %44, %47 : vector<8x128xf32>
    %cst_23 = arith.constant 5.000000e-01 : f32
    %49 = vector.broadcast %cst_23 : f32 to vector<8x128xf32>
    %50 = arith.subf %48, %49 : vector<8x128xf32>
    %cst_24 = arith.constant 0.000000e+00 : f32
    %51 = vector.broadcast %cst_24 : f32 to vector<8x128xf32>
    %52 = arith.cmpf ogt, %50, %51 : vector<8x128xf32>
    %53 = arith.extui %52 : vector<8x128xi1> to vector<8x128xi32>
    %54 = arith.sitofp %53 : vector<8x128xi32> to vector<8x128xf32>
    %c0_25 = arith.constant 0 : index
    %c2_26 = arith.constant 2 : index
    %55 = arith.index_cast %4 : i32 to index
    %c0_27 = arith.constant 0 : index
    %56 = vector.load %arg4[%c0_25, %c2_26, %55, %c0_27] : memref<1x8x8x128xf32, #tpu.memory_space<vmem>>, vector<1x1x8x128xf32>
    %57 = vector.shape_cast %56 : vector<1x1x8x128xf32> to vector<8x128xf32>
    %58 = vector.shape_cast %54 : vector<8x128xf32> to vector<1x1x8x128xf32>
    tpu.vector_store %arg4[%c0_25, %c2_26, %55, %c0_27], %58 {strides = array<i32>} : memref<1x8x8x128xf32, #tpu.memory_space<vmem>>, vector<1x1x8x128xf32>,
    %cst_28 = arith.constant 0.000000e+00 : f32
    %59 = vector.broadcast %cst_28 : f32 to vector<8x128xf32>
    %60 = arith.select %52, %59, %48 : vector<8x128xi1>, vector<8x128xf32>
    %cst_29 = arith.constant 2.000000e-01 : f32
    %61 = vector.broadcast %cst_29 : f32 to vector<8x128xf32>
    %62 = arith.mulf %60, %61 : vector<8x128xf32>
    %c0_30 = arith.constant 0 : index
    %c3 = arith.constant 3 : index
    %63 = arith.index_cast %4 : i32 to index
    %c0_31 = arith.constant 0 : index
    %64 = vector.load %arg3[%c0_30, %c3, %63, %c0_31] : memref<1x8x8x128xf32, #tpu.memory_space<vmem>>, vector<1x1x8x128xf32>
    %65 = vector.shape_cast %64 : vector<1x1x8x128xf32> to vector<8x128xf32>
    %66 = arith.addf %62, %65 : vector<8x128xf32>
    %cst_32 = arith.constant 5.000000e-01 : f32
    %67 = vector.broadcast %cst_32 : f32 to vector<8x128xf32>
    %68 = arith.subf %66, %67 : vector<8x128xf32>
    %cst_33 = arith.constant 0.000000e+00 : f32
    %69 = vector.broadcast %cst_33 : f32 to vector<8x128xf32>
    %70 = arith.cmpf ogt, %68, %69 : vector<8x128xf32>
    %71 = arith.extui %70 : vector<8x128xi1> to vector<8x128xi32>
    %72 = arith.sitofp %71 : vector<8x128xi32> to vector<8x128xf32>
    %c0_34 = arith.constant 0 : index
    %c3_35 = arith.constant 3 : index
    %73 = arith.index_cast %4 : i32 to index
    %c0_36 = arith.constant 0 : index
    %74 = vector.load %arg4[%c0_34, %c3_35, %73, %c0_36] : memref<1x8x8x128xf32, #tpu.memory_space<vmem>>, vector<1x1x8x128xf32>
    %75 = vector.shape_cast %74 : vector<1x1x8x128xf32> to vector<8x128xf32>
    %76 = vector.shape_cast %72 : vector<8x128xf32> to vector<1x1x8x128xf32>
    tpu.vector_store %arg4[%c0_34, %c3_35, %73, %c0_36], %76 {strides = array<i32>} : memref<1x8x8x128xf32, #tpu.memory_space<vmem>>, vector<1x1x8x128xf32>,
    %cst_37 = arith.constant 0.000000e+00 : f32
    %77 = vector.broadcast %cst_37 : f32 to vector<8x128xf32>
    %78 = arith.select %70, %77, %66 : vector<8x128xi1>, vector<8x128xf32>
    %cst_38 = arith.constant 2.000000e-01 : f32
    %79 = vector.broadcast %cst_38 : f32 to vector<8x128xf32>
    %80 = arith.mulf %78, %79 : vector<8x128xf32>
    %c0_39 = arith.constant 0 : index
    %c4 = arith.constant 4 : index
    %81 = arith.index_cast %4 : i32 to index
    %c0_40 = arith.constant 0 : index
    %82 = vector.load %arg3[%c0_39, %c4, %81, %c0_40] : memref<1x8x8x128xf32, #tpu.memory_space<vmem>>, vector<1x1x8x128xf32>
    %83 = vector.shape_cast %82 : vector<1x1x8x128xf32> to vector<8x128xf32>
    %84 = arith.addf %80, %83 : vector<8x128xf32>
    %cst_41 = arith.constant 5.000000e-01 : f32
    %85 = vector.broadcast %cst_41 : f32 to vector<8x128xf32>
    %86 = arith.subf %84, %85 : vector<8x128xf32>
    %cst_42 = arith.constant 0.000000e+00 : f32
    %87 = vector.broadcast %cst_42 : f32 to vector<8x128xf32>
    %88 = arith.cmpf ogt, %86, %87 : vector<8x128xf32>
    %89 = arith.extui %88 : vector<8x128xi1> to vector<8x128xi32>
    %90 = arith.sitofp %89 : vector<8x128xi32> to vector<8x128xf32>
    %c0_43 = arith.constant 0 : index
    %c4_44 = arith.constant 4 : index
    %91 = arith.index_cast %4 : i32 to index
    %c0_45 = arith.constant 0 : index
    %92 = vector.load %arg4[%c0_43, %c4_44, %91, %c0_45] : memref<1x8x8x128xf32, #tpu.memory_space<vmem>>, vector<1x1x8x128xf32>
    %93 = vector.shape_cast %92 : vector<1x1x8x128xf32> to vector<8x128xf32>
    %94 = vector.shape_cast %90 : vector<8x128xf32> to vector<1x1x8x128xf32>
    tpu.vector_store %arg4[%c0_43, %c4_44, %91, %c0_45], %94 {strides = array<i32>} : memref<1x8x8x128xf32, #tpu.memory_space<vmem>>, vector<1x1x8x128xf32>,
    %cst_46 = arith.constant 0.000000e+00 : f32
    %95 = vector.broadcast %cst_46 : f32 to vector<8x128xf32>
    %96 = arith.select %88, %95, %84 : vector<8x128xi1>, vector<8x128xf32>
    %cst_47 = arith.constant 2.000000e-01 : f32
    %97 = vector.broadcast %cst_47 : f32 to vector<8x128xf32>
    %98 = arith.mulf %96, %97 : vector<8x128xf32>
    %c0_48 = arith.constant 0 : index
    %c5 = arith.constant 5 : index
    %99 = arith.index_cast %4 : i32 to index
    %c0_49 = arith.constant 0 : index
    %100 = vector.load %arg3[%c0_48, %c5, %99, %c0_49] : memref<1x8x8x128xf32, #tpu.memory_space<vmem>>, vector<1x1x8x128xf32>
    %101 = vector.shape_cast %100 : vector<1x1x8x128xf32> to vector<8x128xf32>
    %102 = arith.addf %98, %101 : vector<8x128xf32>
    %cst_50 = arith.constant 5.000000e-01 : f32
    %103 = vector.broadcast %cst_50 : f32 to vector<8x128xf32>
    %104 = arith.subf %102, %103 : vector<8x128xf32>
    %cst_51 = arith.constant 0.000000e+00 : f32
    %105 = vector.broadcast %cst_51 : f32 to vector<8x128xf32>
    %106 = arith.cmpf ogt, %104, %105 : vector<8x128xf32>
    %107 = arith.extui %106 : vector<8x128xi1> to vector<8x128xi32>
    %108 = arith.sitofp %107 : vector<8x128xi32> to vector<8x128xf32>
    %c0_52 = arith.constant 0 : index
    %c5_53 = arith.constant 5 : index
    %109 = arith.index_cast %4 : i32 to index
    %c0_54 = arith.constant 0 : index
    %110 = vector.load %arg4[%c0_52, %c5_53, %109, %c0_54] : memref<1x8x8x128xf32, #tpu.memory_space<vmem>>, vector<1x1x8x128xf32>
    %111 = vector.shape_cast %110 : vector<1x1x8x128xf32> to vector<8x128xf32>
    %112 = vector.shape_cast %108 : vector<8x128xf32> to vector<1x1x8x128xf32>
    tpu.vector_store %arg4[%c0_52, %c5_53, %109, %c0_54], %112 {strides = array<i32>} : memref<1x8x8x128xf32, #tpu.memory_space<vmem>>, vector<1x1x8x128xf32>,
    %cst_55 = arith.constant 0.000000e+00 : f32
    %113 = vector.broadcast %cst_55 : f32 to vector<8x128xf32>
    %114 = arith.select %106, %113, %102 : vector<8x128xi1>, vector<8x128xf32>
    %cst_56 = arith.constant 2.000000e-01 : f32
    %115 = vector.broadcast %cst_56 : f32 to vector<8x128xf32>
    %116 = arith.mulf %114, %115 : vector<8x128xf32>
    %c0_57 = arith.constant 0 : index
    %c6 = arith.constant 6 : index
    %117 = arith.index_cast %4 : i32 to index
    %c0_58 = arith.constant 0 : index
    %118 = vector.load %arg3[%c0_57, %c6, %117, %c0_58] : memref<1x8x8x128xf32, #tpu.memory_space<vmem>>, vector<1x1x8x128xf32>
    %119 = vector.shape_cast %118 : vector<1x1x8x128xf32> to vector<8x128xf32>
    %120 = arith.addf %116, %119 : vector<8x128xf32>
    %cst_59 = arith.constant 5.000000e-01 : f32
    %121 = vector.broadcast %cst_59 : f32 to vector<8x128xf32>
    %122 = arith.subf %120, %121 : vector<8x128xf32>
    %cst_60 = arith.constant 0.000000e+00 : f32
    %123 = vector.broadcast %cst_60 : f32 to vector<8x128xf32>
    %124 = arith.cmpf ogt, %122, %123 : vector<8x128xf32>
    %125 = arith.extui %124 : vector<8x128xi1> to vector<8x128xi32>
    %126 = arith.sitofp %125 : vector<8x128xi32> to vector<8x128xf32>
    %c0_61 = arith.constant 0 : index
    %c6_62 = arith.constant 6 : index
    %127 = arith.index_cast %4 : i32 to index
    %c0_63 = arith.constant 0 : index
    %128 = vector.load %arg4[%c0_61, %c6_62, %127, %c0_63] : memref<1x8x8x128xf32, #tpu.memory_space<vmem>>, vector<1x1x8x128xf32>
    %129 = vector.shape_cast %128 : vector<1x1x8x128xf32> to vector<8x128xf32>
    %130 = vector.shape_cast %126 : vector<8x128xf32> to vector<1x1x8x128xf32>
    tpu.vector_store %arg4[%c0_61, %c6_62, %127, %c0_63], %130 {strides = array<i32>} : memref<1x8x8x128xf32, #tpu.memory_space<vmem>>, vector<1x1x8x128xf32>,
    %cst_64 = arith.constant 0.000000e+00 : f32
    %131 = vector.broadcast %cst_64 : f32 to vector<8x128xf32>
    %132 = arith.select %124, %131, %120 : vector<8x128xi1>, vector<8x128xf32>
    %cst_65 = arith.constant 2.000000e-01 : f32
    %133 = vector.broadcast %cst_65 : f32 to vector<8x128xf32>
    %134 = arith.mulf %132, %133 : vector<8x128xf32>
    %c0_66 = arith.constant 0 : index
    %c7 = arith.constant 7 : index
    %135 = arith.index_cast %4 : i32 to index
    %c0_67 = arith.constant 0 : index
    %136 = vector.load %arg3[%c0_66, %c7, %135, %c0_67] : memref<1x8x8x128xf32, #tpu.memory_space<vmem>>, vector<1x1x8x128xf32>
    %137 = vector.shape_cast %136 : vector<1x1x8x128xf32> to vector<8x128xf32>
    %138 = arith.addf %134, %137 : vector<8x128xf32>
    %cst_68 = arith.constant 5.000000e-01 : f32
    %139 = vector.broadcast %cst_68 : f32 to vector<8x128xf32>
    %140 = arith.subf %138, %139 : vector<8x128xf32>
    %cst_69 = arith.constant 0.000000e+00 : f32
    %141 = vector.broadcast %cst_69 : f32 to vector<8x128xf32>
    %142 = arith.cmpf ogt, %140, %141 : vector<8x128xf32>
    %143 = arith.extui %142 : vector<8x128xi1> to vector<8x128xi32>
    %144 = arith.sitofp %143 : vector<8x128xi32> to vector<8x128xf32>
    %c0_70 = arith.constant 0 : index
    %c7_71 = arith.constant 7 : index
    %145 = arith.index_cast %4 : i32 to index
    %c0_72 = arith.constant 0 : index
    %146 = vector.load %arg4[%c0_70, %c7_71, %145, %c0_72] : memref<1x8x8x128xf32, #tpu.memory_space<vmem>>, vector<1x1x8x128xf32>
    %147 = vector.shape_cast %146 : vector<1x1x8x128xf32> to vector<8x128xf32>
    %148 = vector.shape_cast %144 : vector<8x128xf32> to vector<1x1x8x128xf32>
    tpu.vector_store %arg4[%c0_70, %c7_71, %145, %c0_72], %148 {strides = array<i32>} : memref<1x8x8x128xf32, #tpu.memory_space<vmem>>, vector<1x1x8x128xf32>,
    %cst_73 = arith.constant 0.000000e+00 : f32
    %149 = vector.broadcast %cst_73 : f32 to vector<8x128xf32>
    %150 = arith.select %142, %149, %138 : vector<8x128xi1>, vector<8x128xf32>
    %151 = arith.index_cast %4 : i32 to index
    %c0_74 = arith.constant 0 : index
    %152 = vector.load %arg5[%151, %c0_74] : memref<8x128xf32, #tpu.memory_space<vmem>>, vector<8x128xf32>
    tpu.vector_store %arg5[%151, %c0_74], %150 {strides = array<i32>} : memref<8x128xf32, #tpu.memory_space<vmem>>, vector<8x128xf32>,
    %c1_i32 = arith.constant 1 : i32
    return
  }
  func.func @transform_0(%arg0: i32, %arg1: i32, %arg2: i32) -> (i32, i32, i32, i32) {
    %c0_i32 = arith.constant 0 : i32
    %c0_i32_0 = arith.constant 0 : i32
    return %arg0, %arg2, %arg1, %c0_i32 : i32, i32, i32, i32
  }
  func.func @transform_1(%arg0: i32, %arg1: i32, %arg2: i32) -> (i32, i32, i32, i32) {
    %c0_i32 = arith.constant 0 : i32
    %c0_i32_0 = arith.constant 0 : i32
    return %arg0, %arg2, %arg1, %c0_i32 : i32, i32, i32, i32
  }
}

</mosaic_0001>

<llo_original>
// kernel: tpu_custom_call.1
$region0: #{tpu_custom_call.1}
  #allocation0 [shape = 'u32[]', space=smem, size = 0x4, offset = 0x4, fixed_abs, tag = 'smem constant byte address 0x4 - core index']
  #allocation1 [shape = 'u32[144,128]{1,0:T(1,128)}', space=vmem, size = 0x12000, scoped, tag = 'internal scratch']
  #allocation2 [shape = 'f32[8,128]{1,0:T(8,128)}', space=vmem, size = 0x1000, scoped, tag = 'scratch operand']
  %s0 = inlined_call_operand.hbm [shape: f32[2,8,8,128], index: 0, kind: input, shape index: {}]
  %s1 = inlined_call_operand.hbm [shape: f32[2,8,8,128], index: 1, kind: output, shape index: {}]
  %s2 = sld [smem:[#allocation0]]
  $region45: #{tpu_custom_call.1} parent=0
    _
  %s4 = ssub.s32 1, %s2
  %s5 = scalar_select 0, %s4, %s2
  $region1: #{tpu_custom_call.1} parent=0
    #allocation3 [shape = 'u8[65536]{0}', space=vmem, size = 0x10000, scoped, tag = 'input window, operand 0']
    #allocation4 [shape = 's32[2]{0}', space=sflag, size = 0x8, scoped, tag = 'scoped memory for tpu_custom_call.1']
    #allocation5 [shape = 's32[2]{0}', space=sflag, size = 0x8, scoped, tag = 'scoped memory for tpu_custom_call.1']
    #allocation6 [shape = 'u8[65536]{0}', space=vmem, size = 0x10000, scoped, tag = 'output window, operand 0']
    %6 = vsyncpa [#allocation4], 0
    %s7 = scalar_lea.sflag [#allocation4], 1
    %8 = vsyncpa %s7, 0
    %9 = vsyncpa [#allocation5], 0
    %s10 = scalar_lea.sflag [#allocation5], 1
    %11 = vsyncpa %s10, 0
    loop: start=0, step=1, limit=4
    $region2: #{tpu_custom_call.1} parent=1 // loop_pre_header
      _
    $region3: #{tpu_custom_call.1} parent=1 // loop_header
      %s13 = sphi 0, %s17
      %p14 = scmp.ge.s32.totalorder %s13, 4
      %s20 = sphi 0, %s39
      %s21 = sphi 0, %s35
      %s22 = sphi 0, %s31
      %s23 = sphi 0, %s20
      %s24 = sphi 0, %s21
      %s25 = sphi 0, %s22
      %s26 = sphi 0, %s23
      %s27 = sphi 0, %s24
      %s28 = sphi 0, %s25
      %s46 = sphi 0, %s48
      %s49 = sphi 0, %s46
      %s50 = sphi 0, %s49
      %s66 = sphi 0, %s50
      %s76 = sphi 0, %s78
      %s79 = sphi 0, %s76
      %s80 = sphi 0, %s79
      %s96 = sphi 0, %s80
    $region4: #{tpu_custom_call.1} parent=1 // loop_header_branch
      %16 = sbr.rel (%p14) target = $region8
    $region5: #{tpu_custom_call.1} parent=1 // loop_body
      %s18 = ssub.s32 %s13, 1
      %s19 = ssub.s32 %s13, 2
      %s29 = sadd.s32 1, %s22
      %p30 = scmp.ge.s32.totalorder %s29, 1
      %s31 = scalar_select %p30, 0, %s29
      %s32 = sadd.s32 1, %s21
      %s33 = scalar_select %p30, %s32, %s21
      %p34 = scmp.ge.s32.totalorder %s33, 1
      %s35 = scalar_select %p34, 0, %s33
      %s36 = sadd.s32 1, %s20
      %s37 = scalar_select %p34, %s36, %s20
      %p38 = scmp.ge.s32.totalorder %s37, 2
      %s39 = scalar_select %p38, 0, %s37
      %s40 = ssub.s32 %s20, %s39
      %s41 = ssub.s32 %s22, %s31
      %s42 = sor.u32 %s40, %s41
      %s43 = ssub.s32 %s21, %s35
      %s44 = sor.u32 %s42, %s43
      %p45 = scmp.eq.s32.totalorder %s44, 0
      %s47 = sadd.s32 %s46, 1
      %s48 = scalar_select %p45, %s46, %s47
      %p51 = pneg %p45
      %p52 = scmp.eq.s32.totalorder %s13, 1
      %p53 = por %p51, %p52
      %p54 = scmp.ne.s32.totalorder %s46, %s49
      %p55 = scmp.eq.s32.totalorder %s13, 0
      %p56 = por %p54, %p55
      %p57 = scmp.ne.s32.totalorder %s46, %s49
      %p58 = scmp.eq.s32.totalorder %s18, 1
      %p59 = por %p57, %p58
      %p60 = scmp.ne.s32.totalorder %s49, %s50
      %p61 = scmp.eq.s32.totalorder %s18, 0
      %p62 = por %p60, %p61
      %p63 = scmp.ne.s32.totalorder %s49, %s50
      %p64 = scmp.eq.s32.totalorder %s19, 1
      %p65 = por %p63, %p64
      %p67 = scmp.ne.s32.totalorder %s50, %s66
      %p68 = scmp.eq.s32.totalorder %s19, 0
      %p69 = por %p67, %p68
      %s70 = ssub.s32 %s20, %s39
      %s71 = ssub.s32 %s22, %s31
      %s72 = sor.u32 %s70, %s71
      %s73 = ssub.s32 %s21, %s35
      %s74 = sor.u32 %s72, %s73
      %p75 = scmp.eq.s32.totalorder %s74, 0
      %s77 = sadd.s32 %s76, 1
      %s78 = scalar_select %p75, %s76, %s77
      %p81 = pneg %p75
      %p82 = scmp.eq.s32.totalorder %s13, 1
      %p83 = por %p81, %p82
      %p84 = scmp.ne.s32.totalorder %s76, %s79
      %p85 = scmp.eq.s32.totalorder %s13, 0
      %p86 = por %p84, %p85
      %p87 = scmp.ne.s32.totalorder %s76, %s79
      %p88 = scmp.eq.s32.totalorder %s18, 1
      %p89 = por %p87, %p88
      %p90 = scmp.ne.s32.totalorder %s79, %s80
      %p91 = scmp.eq.s32.totalorder %s18, 0
      %p92 = por %p90, %p91
      %p93 = scmp.ne.s32.totalorder %s79, %s80
      %p94 = scmp.eq.s32.totalorder %s19, 1
      %p95 = por %p93, %p94
      %p97 = scmp.ne.s32.totalorder %s80, %s96
      %p98 = scmp.eq.s32.totalorder %s19, 0
      %p99 = por %p97, %p98
      %p100 = scmp.le.s32.totalorder 1, %s13
      %p101 = scmp.lt.s32.totalorder %s13, 3
      %p102 = pnand %p100, %p101
      %p103 = pneg %p102
      // Predicated region
      $region9: #{tpu_custom_call.1} parent=5 // pred_check
        _
      $region10: #{tpu_custom_call.1} parent=5 // pred_check_branch
        %105 = sbr.rel (%p102) target = $region12
      $region11: #{tpu_custom_call.1} parent=5 // pred_region
        %s106 = ssub.s32 %s13, 1
      $region12: #{tpu_custom_call.1} parent=5 // pred_fallthru
        _
      %p107 = scmp.lt.s32.totalorder %s13, 2
      // Predicated region
      $region13: #{tpu_custom_call.1} parent=5 // pred_check
        %p108 = pneg %p107
      $region14: #{tpu_custom_call.1} parent=5 // pred_check_branch
        %110 = sbr.rel (%p108) target = $region16
      $region15: #{tpu_custom_call.1} parent=5 // pred_region
        // Predicated region
        $region17: #{tpu_custom_call.1} parent=15 // pred_check
          %p111 = pneg %p56
        $region18: #{tpu_custom_call.1} parent=15 // pred_check_branch
          %113 = sbr.rel (%p111) target = $region20
        $region19: #{tpu_custom_call.1} parent=15 // pred_region
          %s114 = sand.u32 %s46, 1
          %s115 = scalar_lea.sflag [#allocation4], %s114
          %s116 = sand.u32 %s46, 1
          %s117 = smul.addr %s116, 64
          %s118 = scalar_lea.vmem [#allocation3], %s117
          %s119 = smul.u32 8, %s22
          %s121 = ssub.s32 1024, 1024
          %122 = vsyncadd %s115, %s121
          %s123 = sadd.s32 %s21, %s119
          %s124 = smul.addr %s20, 8
          %s125 = sadd.s32 %s123, %s124
          %s126 = smul.addr %s125, 128
          %s127 = scalar_lea.hbm %s0, %s126
          %s128 = sshll.u32 %s118, 4
          %s129 = int_to_ptr.vmem [resolvable:$true] %s128
          %134 = dma.hbm_to_vmem [thread:$0]  %s127, 1024, %s129, %s115, 128, 128, 8
        $region20: #{tpu_custom_call.1} parent=15 // pred_fallthru
          _
      $region16: #{tpu_custom_call.1} parent=5 // pred_fallthru
        _
      %p135 = scmp.le.s32.totalorder 1, %s13
      %p136 = scmp.lt.s32.totalorder %s13, 3
      %p137 = pnand %p135, %p136
      %p138 = pneg %p137
      // Predicated region
      $region21: #{tpu_custom_call.1} parent=5 // pred_check
        _
      $region22: #{tpu_custom_call.1} parent=5 // pred_check_branch
        %140 = sbr.rel (%p137) target = $region24
      $region23: #{tpu_custom_call.1} parent=5 // pred_region
        %s141 = ssub.s32 %s13, 1
        %s142 = sand.u32 %s49, 1
        %s143 = scalar_lea.sflag [#allocation4], %s142
        %s144 = sand.u32 %s49, 1
        %s145 = smul.addr %s144, 64
        %s146 = scalar_lea.vmem [#allocation3], %s145
        // Predicated region
        $region25: #{tpu_custom_call.1} parent=23 // pred_check
          %p147 = pneg %p62
        $region26: #{tpu_custom_call.1} parent=23 // pred_check_branch
          %149 = sbr.rel (%p147) target = $region28
        $region27: #{tpu_custom_call.1} parent=23 // pred_region
          %150 = dma.done %s143, 1024
        $region28: #{tpu_custom_call.1} parent=23 // pred_fallthru
          _
        %s151 = sand.u32 %s49, 1
        %s152 = scalar_lea.sflag [#allocation4], %s151
        %s153 = sand.u32 %s49, 1
        %s154 = smul.addr %s153, 64
        %s155 = scalar_lea.vmem [#allocation3], %s154
        %p156 = pneg %p62
        %p157 = pneg %p59
        %p158 = pneg %p92
        %p159 = pneg %p89
        %s160 = sand.u32 %s79, 1
        %s161 = scalar_lea.sflag [#allocation5], %s160
        %s162 = sand.u32 %s79, 1
        %s163 = smul.addr %s162, 64
        %s164 = scalar_lea.vmem [#allocation6], %s163
        %s165 = smul.u32 8, %s25
        %s166 = smul.u32 8, %s25
        %p167 = scmp.eq.s32.totalorder %s25, 0
        // Predicated region
        $region29: #{tpu_custom_call.1} parent=23 // pred_check
          %p168 = pneg %p167
        $region30: #{tpu_custom_call.1} parent=23 // pred_check_branch
          %170 = sbr.rel (%p168) target = $region32
        $region31: #{tpu_custom_call.1} parent=23 // pred_region
          %171 = vst [vmem:[#allocation2] sm:$0xff] 0.0
        $region32: #{tpu_custom_call.1} parent=23 // pred_fallthru
          _
        %v172 = vld [vmem:[#allocation2] sm:$0xff]
        %v173 = vmul.f32 %v172, 0.2
        %v174 = vld [vmem:[%s146] sm:$0xff]
        %v175 = vadd.f32 %v173, %v174
        %v176 = vsub.f32 %v175, 0.5
        %vm177 = vcmp.gt.f32.partialorder %v176, 0.0
        %v178 = vsel %vm177, 1, 0
        %v179 = vcvt.s32.f32 %v178
        %180 = vst [vmem:[%s164] sm:$0xff] %v179
        %v181 = vsel %vm177, 0.0, %v175
        %v182 = vmul.f32 %v181, 0.2
        %s183 = sadd.s32 0, 8
        %s184 = scalar_lea.vmem %s146, %s183 [#allocation3]
        %v185 = vld [vmem:[%s184] sm:$0xff]
        %v186 = vadd.f32 %v182, %v185
        %v187 = vsub.f32 %v186, 0.5
        %vm188 = vcmp.gt.f32.partialorder %v187, 0.0
        %v189 = vsel %vm188, 1, 0
        %v190 = vcvt.s32.f32 %v189
        %s191 = scalar_lea.vmem %s164, %s183 [#allocation6]
        %192 = vst [vmem:[%s191] sm:$0xff] %v190
        %v193 = vsel %vm188, 0.0, %v186
        %v194 = vmul.f32 %v193, 0.2
        %s195 = sadd.s32 0, 16
        %s196 = scalar_lea.vmem %s146, %s195 [#allocation3]
        %v197 = vld [vmem:[%s196] sm:$0xff]
        %v198 = vadd.f32 %v194, %v197
        %v199 = vsub.f32 %v198, 0.5
        %vm200 = vcmp.gt.f32.partialorder %v199, 0.0
        %v201 = vsel %vm200, 1, 0
        %v202 = vcvt.s32.f32 %v201
        %s203 = scalar_lea.vmem %s164, %s195 [#allocation6]
        %204 = vst [vmem:[%s203] sm:$0xff] %v202
        %v205 = vsel %vm200, 0.0, %v198
        %v206 = vmul.f32 %v205, 0.2
        %s207 = sadd.s32 0, 24
        %s208 = scalar_lea.vmem %s146, %s207 [#allocation3]
        %v209 = vld [vmem:[%s208] sm:$0xff]
        %v210 = vadd.f32 %v206, %v209
        %v211 = vsub.f32 %v210, 0.5
        %vm212 = vcmp.gt.f32.partialorder %v211, 0.0
        %v213 = vsel %vm212, 1, 0
        %v214 = vcvt.s32.f32 %v213
        %s215 = scalar_lea.vmem %s164, %s207 [#allocation6]
        %216 = vst [vmem:[%s215] sm:$0xff] %v214
        %v217 = vsel %vm212, 0.0, %v210
        %v218 = vmul.f32 %v217, 0.2
        %s219 = sadd.s32 0, 32
        %s220 = scalar_lea.vmem %s146, %s219 [#allocation3]
        %v221 = vld [vmem:[%s220] sm:$0xff]
        %v222 = vadd.f32 %v218, %v221
        %v223 = vsub.f32 %v222, 0.5
        %vm224 = vcmp.gt.f32.partialorder %v223, 0.0
        %v225 = vsel %vm224, 1, 0
        %v226 = vcvt.s32.f32 %v225
        %s227 = scalar_lea.vmem %s164, %s219 [#allocation6]
        %228 = vst [vmem:[%s227] sm:$0xff] %v226
        %v229 = vsel %vm224, 0.0, %v222
        %v230 = vmul.f32 %v229, 0.2
        %s231 = sadd.s32 0, 40
        %s232 = scalar_lea.vmem %s146, %s231 [#allocation3]
        %v233 = vld [vmem:[%s232] sm:$0xff]
        %v234 = vadd.f32 %v230, %v233
        %v235 = vsub.f32 %v234, 0.5
        %vm236 = vcmp.gt.f32.partialorder %v235, 0.0
        %v237 = vsel %vm236, 1, 0
        %v238 = vcvt.s32.f32 %v237
        %s239 = scalar_lea.vmem %s164, %s231 [#allocation6]
        %240 = vst [vmem:[%s239] sm:$0xff] %v238
        %v241 = vsel %vm236, 0.0, %v234
        %v242 = vmul.f32 %v241, 0.2
        %s243 = sadd.s32 0, 48
        %s244 = scalar_lea.vmem %s146, %s243 [#allocation3]
        %v245 = vld [vmem:[%s244] sm:$0xff]
        %v246 = vadd.f32 %v242, %v245
        %v247 = vsub.f32 %v246, 0.5
        %vm248 = vcmp.gt.f32.partialorder %v247, 0.0
        %v249 = vsel %vm248, 1, 0
        %v250 = vcvt.s32.f32 %v249
        %s251 = scalar_lea.vmem %s164, %s243 [#allocation6]
        %252 = vst [vmem:[%s251] sm:$0xff] %v250
        %v253 = vsel %vm248, 0.0, %v246
        %v254 = vmul.f32 %v253, 0.2
        %s255 = sadd.s32 0, 56
        %s256 = scalar_lea.vmem %s146, %s255 [#allocation3]
        %v257 = vld [vmem:[%s256] sm:$0xff]
        %v258 = vadd.f32 %v254, %v257
        %v259 = vsub.f32 %v258, 0.5
        %vm260 = vcmp.gt.f32.partialorder %v259, 0.0
        %v261 = vsel %vm260, 1, 0
        %v262 = vcvt.s32.f32 %v261
        %s263 = scalar_lea.vmem %s164, %s255 [#allocation6]
        %264 = vst [vmem:[%s263] sm:$0xff] %v262
        %v265 = vsel %vm260, 0.0, %v258
        %266 = vst [vmem:[#allocation2] sm:$0xff] %v265
        %s267 = sand.u32 %s79, 1
        %s268 = scalar_lea.sflag [#allocation5], %s267
        %s269 = sand.u32 %s79, 1
        %s270 = smul.addr %s269, 64
        %s271 = scalar_lea.vmem [#allocation6], %s270
        // Predicated region
        $region33: #{tpu_custom_call.1} parent=23 // pred_check
          %p272 = pneg %p89
        $region34: #{tpu_custom_call.1} parent=23 // pred_check_branch
          %274 = sbr.rel (%p272) target = $region36
        $region35: #{tpu_custom_call.1} parent=23 // pred_region
          %s275 = smul.u32 8, %s25
          %s277 = ssub.s32 1024, 1024
          %278 = vsyncadd %s268, %s277
          %s279 = sadd.s32 %s24, %s275
          %s280 = smul.addr %s23, 8
          %s281 = sadd.s32 %s279, %s280
          %s282 = smul.addr %s281, 128
          %s283 = scalar_lea.hbm %s1, %s282
          %s284 = sshll.u32 %s271, 4
          %s285 = int_to_ptr.vmem [resolvable:$true] %s284
          %290 = dma.vmem_to_hbm [thread:$0]  %s285, 1024, %s283, %s268, 128, 128, 8
        $region36: #{tpu_custom_call.1} parent=23 // pred_fallthru
          _
      $region24: #{tpu_custom_call.1} parent=5 // pred_fallthru
        _
      %p291 = scmp.le.s32.totalorder 2, %s13
      // Predicated region
      $region37: #{tpu_custom_call.1} parent=5 // pred_check
        %p292 = pneg %p291
      $region38: #{tpu_custom_call.1} parent=5 // pred_check_branch
        %294 = sbr.rel (%p292) target = $region40
      $region39: #{tpu_custom_call.1} parent=5 // pred_region
        %s295 = ssub.s32 %s13, 2
        // Predicated region
        $region41: #{tpu_custom_call.1} parent=39 // pred_check
          %p296 = pneg %p95
        $region42: #{tpu_custom_call.1} parent=39 // pred_check_branch
          %298 = sbr.rel (%p296) target = $region44
        $region43: #{tpu_custom_call.1} parent=39 // pred_region
          %s299 = sand.u32 %s80, 1
          %s300 = scalar_lea.sflag [#allocation5], %s299
          %s301 = sand.u32 %s80, 1
          %s302 = smul.addr %s301, 64
          %s303 = scalar_lea.vmem [#allocation6], %s302
          %304 = dma.done %s300, 1024
        $region44: #{tpu_custom_call.1} parent=39 // pred_fallthru
          _
      $region40: #{tpu_custom_call.1} parent=5 // pred_fallthru
        _
    $region6: #{tpu_custom_call.1} parent=1 // loop_footer
      %s17 = sadd.s32 1, %s13
    $region7: #{tpu_custom_call.1} parent=1 // loop_footer_branch
      %12 = sbr.rel target = $region3
    $region8: #{tpu_custom_call.1} parent=1 // loop_exit
      _
    %305 = vsyncpa [#allocation4], 1
    %s306 = scalar_lea.sflag [#allocation4], 1
    %307 = vsyncpa %s306, 1
    %308 = vsyncpa [#allocation5], 1
    %s309 = scalar_lea.sflag [#allocation5], 1
    %310 = vsyncpa %s309, 1

</llo_original>
